<compile_context>
chip_gen: v6e
topology: v6e:2x2x1
jax: 0.10.0
libtpu: 0.0.40
codegen_flags: <defaults>
</compile_context>

<pallas_src>
import jax
import jax.numpy as jnp
from jax.experimental import pallas as pl
from jax.experimental.pallas import tpu as pltpu


def _maxpool2x2_kernel(x_ref, o_ref):
    # x_ref: (Bc, H, W) block of image planes; o_ref: (Bc, H//2, W//2).
    bc, h, w = x_ref.shape
    ho, wo = h // 2, w // 2

    # Row (sublane) pairing: even rows vs. odd rows via stride-2 ref loads.
    r_even = x_ref[:, pl.ds(0, ho, 2), :]      # rows 0, 2, 4, ... -> (Bc, Ho, W)
    r_odd = x_ref[:, pl.ds(1, ho, 2), :]       # rows 1, 3, 5, ... -> (Bc, Ho, W)
    rmax = jnp.maximum(r_even, r_odd)          # (Bc, Ho, W)

    # Column (lane) pairing: direct even/odd-lane max (no masked 3D blow-up).
    o_ref[...] = jnp.max(rmax.reshape(bc, ho, wo, 2), axis=-1)  # (Bc, Ho, Wo)


def _pick_block_planes(num_planes, plane_bytes, vmem_budget_bytes=4 * 1024 * 1024):
    """Planes per grid step: large contiguous DMA blocks, modest VMEM footprint."""
    # Double-buffered input block + double-buffered output block (1/4 of input).
    per_plane = 2 * (plane_bytes + plane_bytes // 4)
    bc = max(1, vmem_budget_bytes // max(per_plane, 1))
    bc = int(min(bc, num_planes))
    # Keep at least two grid steps when possible so both v7x TensorCores get work.
    if bc >= num_planes and num_planes > 1:
        bc = (num_planes + 1) // 2
    return bc


def downsample_maxpool2x2(x):
    """MaxPool2d(kernel_size=2, stride=2) over NCHW input (PyTorch semantics)."""
    n, c, h, w = x.shape
    ho, wo = h // 2, w // 2
    h2, w2 = 2 * ho, 2 * wo
    # PyTorch floor-truncates odd trailing rows/cols.
    if (h, w) != (h2, w2):
        x = x[:, :, :h2, :w2]

    planes = n * c
    xb = x.reshape(planes, h2, w2)                       # pure view

    itemsize = jnp.dtype(x.dtype).itemsize
    bc = _pick_block_planes(planes, h2 * w2 * itemsize)
    grid = (pl.cdiv(planes, bc),)

    out = pl.pallas_call(
        _maxpool2x2_kernel,
        out_shape=jax.ShapeDtypeStruct((planes, ho, wo), x.dtype),
        grid=grid,
        in_specs=[pl.BlockSpec((bc, h2, w2), lambda b: (b, 0, 0))],
        out_specs=pl.BlockSpec((bc, ho, wo), lambda b: (b, 0, 0)),
        compiler_params=pltpu.CompilerParams(
            dimension_semantics=("parallel",)),
    )(xb)
    return out.reshape(n, c, ho, wo)


if __name__ == "__main__":
    key = jax.random.PRNGKey(0)
    x = jax.random.normal(key, (2, 4, 16, 16), dtype=jnp.float32)

    y = downsample_maxpool2x2(x)
    jax.block_until_ready(y)

    # Reference MaxPool2d(2) semantics in plain JAX.
    n, c, h, w = x.shape
    ref = x.reshape(n, c, h // 2, 2, w // 2, 2).max(axis=(3, 5))
    assert y.shape == (2, 4, 8, 8), y.shape
    assert jnp.allclose(y, ref), "mismatch vs reference maxpool"

    print("KERNEL_OK")
</pallas_src>

<mosaic_0001>
module attributes {stable_mosaic.version = 11 : i64} {
  func.func @_maxpool2x2_kernel(%arg0: i32, %arg1: memref<4x16x16xf32, #tpu.memory_space<vmem>>, %arg2: memref<4x8x8xf32, #tpu.memory_space<vmem>>) attributes {dimension_semantics = [#tpu.dimension_semantics<parallel>], iteration_bounds = array<i64: 2>, scalar_prefetch = 0 : i64, scratch_operands = 0 : i64, tpu.core_type = #tpu.core_type<tc>, window_params = [{transform_indices = @transform_0, window_bounds = array<i64: 4, 16, 16>}, {transform_indices = @transform_1, window_bounds = array<i64: 4, 8, 8>}]} {
    %c0 = arith.constant 0 : index
    %c0_0 = arith.constant 0 : index
    %c0_1 = arith.constant 0 : index
    %0 = tpu.strided_load %arg1[%c0, %c0_0, %c0_1] {strides = array<i32: 1, 2, 1>} : memref<4x16x16xf32, #tpu.memory_space<vmem>>, vector<4x8x16xf32>
    %c0_2 = arith.constant 0 : index
    %c1 = arith.constant 1 : index
    %c0_3 = arith.constant 0 : index
    %1 = tpu.strided_load %arg1[%c0_2, %c1, %c0_3] {strides = array<i32: 1, 2, 1>} : memref<4x16x16xf32, #tpu.memory_space<vmem>>, vector<4x8x16xf32>
    %2 = arith.maximumf %0, %1 : vector<4x8x16xf32>
    %3 = vector.shape_cast %2 : vector<4x8x16xf32> to vector<4x8x8x2xf32>
    %cst = arith.constant dense<0xFF800000> : vector<4x8x8xf32>
    %4 = vector.multi_reduction <maximumf>, %3, %cst [3] : vector<4x8x8x2xf32> to vector<4x8x8xf32>
    %c0_4 = arith.constant 0 : index
    %c0_5 = arith.constant 0 : index
    %c0_6 = arith.constant 0 : index
    %5 = vector.load %arg2[%c0_4, %c0_5, %c0_6] : memref<4x8x8xf32, #tpu.memory_space<vmem>>, vector<4x8x8xf32>
    tpu.vector_store %arg2[%c0_4, %c0_5, %c0_6], %4 {strides = array<i32>} : memref<4x8x8xf32, #tpu.memory_space<vmem>>, vector<4x8x8xf32>,
    return
  }
  func.func @transform_0(%arg0: i32) -> (i32, i32, i32) {
    %c0_i32 = arith.constant 0 : i32
    %c0_i32_0 = arith.constant 0 : i32
    %c0_i32_1 = arith.constant 0 : i32
    return %arg0, %c0_i32, %c0_i32_0 : i32, i32, i32
  }
  func.func @transform_1(%arg0: i32) -> (i32, i32, i32) {
    %c0_i32 = arith.constant 0 : i32
    %c0_i32_0 = arith.constant 0 : i32
    %c0_i32_1 = arith.constant 0 : i32
    return %arg0, %c0_i32, %c0_i32_0 : i32, i32, i32
  }
}

</mosaic_0001>

<llo_original>
// kernel: tpu_custom_call.1
$region0: #{tpu_custom_call.1}
  #allocation0 [shape = 'u32[]', space=smem, size = 0x4, offset = 0x4, fixed_abs, tag = 'smem constant byte address 0x4 - core index']
  #allocation1 [shape = 'u32[144,128]{1,0:T(1,128)}', space=vmem, size = 0x12000, scoped, tag = 'internal scratch']
  %s0 = inlined_call_operand.hbm [shape: f32[8,16,16], index: 0, kind: input, shape index: {}]
  %s1 = inlined_call_operand.hbm [shape: f32[8,8,8], index: 1, kind: output, shape index: {}]
  %s2 = sld [smem:[#allocation0]]
  $region41: #{tpu_custom_call.1} parent=0
    _
  %s4 = ssub.s32 1, %s2
  %s5 = scalar_select 0, %s4, %s2
  $region1: #{tpu_custom_call.1} parent=0
    #allocation2 [shape = 'u8[65536]{0}', space=vmem, size = 0x10000, scoped, tag = 'input window, operand 0']
    #allocation3 [shape = 's32[2]{0}', space=sflag, size = 0x8, scoped, tag = 'scoped memory for tpu_custom_call.1']
    #allocation4 [shape = 's32[2]{0}', space=sflag, size = 0x8, scoped, tag = 'scoped memory for tpu_custom_call.1']
    #allocation5 [shape = 'u8[32768]{0}', space=vmem, size = 0x8000, scoped, tag = 'output window, operand 0']
    %6 = vsyncpa [#allocation3], 0
    %s7 = scalar_lea.sflag [#allocation3], 1
    %8 = vsyncpa %s7, 0
    %9 = vsyncpa [#allocation4], 0
    %s10 = scalar_lea.sflag [#allocation4], 1
    %11 = vsyncpa %s10, 0
    loop: start=0, step=1, limit=4
    $region2: #{tpu_custom_call.1} parent=1 // loop_pre_header
      _
    $region3: #{tpu_custom_call.1} parent=1 // loop_header
      %s13 = sphi 0, %s17
      %p14 = scmp.ge.s32.totalorder %s13, 4
      %s23 = sphi 0, %s25
      %s26 = sphi 0, %s23
      %s27 = sphi 0, %s26
      %s43 = sphi 0, %s27
      %s49 = sphi 0, %s51
      %s52 = sphi 0, %s49
      %s53 = sphi 0, %s52
      %s69 = sphi 0, %s53
    $region4: #{tpu_custom_call.1} parent=1 // loop_header_branch
      %16 = sbr.rel (%p14) target = $region8
    $region5: #{tpu_custom_call.1} parent=1 // loop_body
      %s18 = ssub.s32 %s13, 1
      %s19 = ssub.s32 %s13, 2
      %s20 = sadd.s32 %s13, 1
      %s21 = ssub.s32 %s13, %s20
      %p22 = scmp.eq.s32.totalorder %s21, 0
      %s24 = sadd.s32 %s23, 1
      %s25 = scalar_select %p22, %s23, %s24
      %p28 = pneg %p22
      %p29 = scmp.eq.s32.totalorder %s13, 1
      %p30 = por %p28, %p29
      %p31 = scmp.ne.s32.totalorder %s23, %s26
      %p32 = scmp.eq.s32.totalorder %s13, 0
      %p33 = por %p31, %p32
      %p34 = scmp.ne.s32.totalorder %s23, %s26
      %p35 = scmp.eq.s32.totalorder %s18, 1
      %p36 = por %p34, %p35
      %p37 = scmp.ne.s32.totalorder %s26, %s27
      %p38 = scmp.eq.s32.totalorder %s18, 0
      %p39 = por %p37, %p38
      %p40 = scmp.ne.s32.totalorder %s26, %s27
      %p41 = scmp.eq.s32.totalorder %s19, 1
      %p42 = por %p40, %p41
      %p44 = scmp.ne.s32.totalorder %s27, %s43
      %p45 = scmp.eq.s32.totalorder %s19, 0
      %p46 = por %p44, %p45
      %s47 = ssub.s32 %s13, %s20
      %p48 = scmp.eq.s32.totalorder %s47, 0
      %s50 = sadd.s32 %s49, 1
      %s51 = scalar_select %p48, %s49, %s50
      %p54 = pneg %p48
      %p55 = scmp.eq.s32.totalorder %s13, 1
      %p56 = por %p54, %p55
      %p57 = scmp.ne.s32.totalorder %s49, %s52
      %p58 = scmp.eq.s32.totalorder %s13, 0
      %p59 = por %p57, %p58
      %p60 = scmp.ne.s32.totalorder %s49, %s52
      %p61 = scmp.eq.s32.totalorder %s18, 1
      %p62 = por %p60, %p61
      %p63 = scmp.ne.s32.totalorder %s52, %s53
      %p64 = scmp.eq.s32.totalorder %s18, 0
      %p65 = por %p63, %p64
      %p66 = scmp.ne.s32.totalorder %s52, %s53
      %p67 = scmp.eq.s32.totalorder %s19, 1
      %p68 = por %p66, %p67
      %p70 = scmp.ne.s32.totalorder %s53, %s69
      %p71 = scmp.eq.s32.totalorder %s19, 0
      %p72 = por %p70, %p71
      %p73 = scmp.le.s32.totalorder 1, %s13
      %p74 = scmp.lt.s32.totalorder %s13, 3
      %p75 = pnand %p73, %p74
      %p76 = pneg %p75
      // Predicated region
      $region9: #{tpu_custom_call.1} parent=5 // pred_check
        _
      $region10: #{tpu_custom_call.1} parent=5 // pred_check_branch
        %78 = sbr.rel (%p75) target = $region12
      $region11: #{tpu_custom_call.1} parent=5 // pred_region
        %s79 = ssub.s32 %s13, 1
      $region12: #{tpu_custom_call.1} parent=5 // pred_fallthru
        _
      %p80 = scmp.lt.s32.totalorder %s13, 2
      // Predicated region
      $region13: #{tpu_custom_call.1} parent=5 // pred_check
        %p81 = pneg %p80
      $region14: #{tpu_custom_call.1} parent=5 // pred_check_branch
        %83 = sbr.rel (%p81) target = $region16
      $region15: #{tpu_custom_call.1} parent=5 // pred_region
        // Predicated region
        $region17: #{tpu_custom_call.1} parent=15 // pred_check
          %p84 = pneg %p33
        $region18: #{tpu_custom_call.1} parent=15 // pred_check_branch
          %86 = sbr.rel (%p84) target = $region20
        $region19: #{tpu_custom_call.1} parent=15 // pred_region
          %s87 = sand.u32 %s23, 1
          %s88 = scalar_lea.sflag [#allocation3], %s87
          %s89 = sand.u32 %s23, 1
          %s90 = smul.addr %s89, 64
          %s91 = scalar_lea.vmem [#allocation2], %s90
          %s92 = smul.u32 4, %s13
          %s94 = ssub.s32 1024, 1024
          %95 = vsyncadd %s88, %s94
          %s96 = smul.addr %s92, 2
          %s97 = smul.addr %s96, 128
          %s98 = scalar_lea.hbm %s0, %s97
          %s99 = sshll.u32 %s91, 4
          %s100 = int_to_ptr.vmem [resolvable:$true] %s99
          %105 = dma.hbm_to_vmem [thread:$0]  %s98, 1024, %s100, %s88, 128, 128, 8
        $region20: #{tpu_custom_call.1} parent=15 // pred_fallthru
          _
      $region16: #{tpu_custom_call.1} parent=5 // pred_fallthru
        _
      %p106 = scmp.le.s32.totalorder 1, %s13
      %p107 = scmp.lt.s32.totalorder %s13, 3
      %p108 = pnand %p106, %p107
      %p109 = pneg %p108
      // Predicated region
      $region21: #{tpu_custom_call.1} parent=5 // pred_check
        _
      $region22: #{tpu_custom_call.1} parent=5 // pred_check_branch
        %111 = sbr.rel (%p108) target = $region24
      $region23: #{tpu_custom_call.1} parent=5 // pred_region
        %s112 = ssub.s32 %s13, 1
        %s113 = sand.u32 %s26, 1
        %s114 = scalar_lea.sflag [#allocation3], %s113
        %s115 = sand.u32 %s26, 1
        %s116 = smul.addr %s115, 64
        %s117 = scalar_lea.vmem [#allocation2], %s116
        // Predicated region
        $region25: #{tpu_custom_call.1} parent=23 // pred_check
          %p118 = pneg %p39
        $region26: #{tpu_custom_call.1} parent=23 // pred_check_branch
          %120 = sbr.rel (%p118) target = $region28
        $region27: #{tpu_custom_call.1} parent=23 // pred_region
          %121 = dma.done %s114, 1024
        $region28: #{tpu_custom_call.1} parent=23 // pred_fallthru
          _
        %s122 = sand.u32 %s26, 1
        %s123 = scalar_lea.sflag [#allocation3], %s122
        %s124 = sand.u32 %s26, 1
        %s125 = smul.addr %s124, 64
        %s126 = scalar_lea.vmem [#allocation2], %s125
        %p127 = pneg %p39
        %p128 = pneg %p36
        %p129 = pneg %p65
        %p130 = pneg %p62
        %s131 = sand.u32 %s52, 1
        %s132 = scalar_lea.sflag [#allocation4], %s131
        %s133 = sand.u32 %s52, 1
        %s134 = smul.addr %s133, 32
        %s135 = scalar_lea.vmem [#allocation5], %s134
        %s136 = smul.u32 4, %s18
        %s137 = smul.u32 4, %s18
        %v138 = vld [vmem:[%s117] ss:$2 sm:$0xff]
        %s139 = scalar_lea.vmem %s117, 16 [#allocation2]
        %v140 = vld [vmem:[%s139] ss:$2 sm:$0xff]
        %s141 = scalar_lea.vmem %s117, 32 [#allocation2]
        %v142 = vld [vmem:[%s141] ss:$2 sm:$0xff]
        %s143 = scalar_lea.vmem %s117, 48 [#allocation2]
        %v144 = vld [vmem:[%s143] ss:$2 sm:$0xff]
        %s145 = scalar_lea.vmem %s117, 1 [#allocation2]
        %v146 = vld [vmem:[%s145] ss:$2 sm:$0xff]
        %s147 = scalar_lea.vmem %s117, 17 [#allocation2]
        %v148 = vld [vmem:[%s147] ss:$2 sm:$0xff]
        %s149 = scalar_lea.vmem %s117, 33 [#allocation2]
        %v150 = vld [vmem:[%s149] ss:$2 sm:$0xff]
        %s151 = scalar_lea.vmem %s117, 49 [#allocation2]
        %v152 = vld [vmem:[%s151] ss:$2 sm:$0xff]
        %v153 = vmax.f32 %v138, %v146
        %v154 = vmax.f32 %v140, %v148
        %v155 = vmax.f32 %v142, %v150
        %v156 = vmax.f32 %v144, %v152
        %161 = vrot.lane.b32.xlu0 %v153, 126
        %v162 = vpop.permute.xlu0 %161
        %163 = vrot.lane.b32.xlu0 %v154, 126
        %v164 = vpop.permute.xlu0 %163
        %165 = vrot.lane.b32.xlu0 %v155, 126
        %v166 = vpop.permute.xlu0 %165
        %167 = vrot.lane.b32.xlu0 %v156, 126
        %v168 = vpop.permute.xlu0 %167
        %173 = vrot.lane.b32.xlu0 %v153, 124
        %v174 = vpop.permute.xlu0 %173
        %175 = vrot.lane.b32.xlu0 %v154, 124
        %v176 = vpop.permute.xlu0 %175
        %177 = vrot.lane.b32.xlu0 %v155, 124
        %v178 = vpop.permute.xlu0 %177
        %179 = vrot.lane.b32.xlu0 %v156, 124
        %v180 = vpop.permute.xlu0 %179
        %185 = vrot.lane.b32.xlu0 %v153, 122
        %v186 = vpop.permute.xlu0 %185
        %187 = vrot.lane.b32.xlu0 %v154, 122
        %v188 = vpop.permute.xlu0 %187
        %189 = vrot.lane.b32.xlu0 %v155, 122
        %v190 = vpop.permute.xlu0 %189
        %191 = vrot.lane.b32.xlu0 %v156, 122
        %v192 = vpop.permute.xlu0 %191
        %197 = vrot.lane.b32.xlu0 %v153, 120
        %v198 = vpop.permute.xlu0 %197
        %199 = vrot.lane.b32.xlu0 %v154, 120
        %v200 = vpop.permute.xlu0 %199
        %201 = vrot.lane.b32.xlu0 %v155, 120
        %v202 = vpop.permute.xlu0 %201
        %203 = vrot.lane.b32.xlu0 %v156, 120
        %v204 = vpop.permute.xlu0 %203
        %209 = vrot.lane.b32.xlu0 %v153, 118
        %v210 = vpop.permute.xlu0 %209
        %211 = vrot.lane.b32.xlu0 %v154, 118
        %v212 = vpop.permute.xlu0 %211
        %213 = vrot.lane.b32.xlu0 %v155, 118
        %v214 = vpop.permute.xlu0 %213
        %215 = vrot.lane.b32.xlu0 %v156, 118
        %v216 = vpop.permute.xlu0 %215
        %221 = vrot.lane.b32.xlu0 %v153, 116
        %v222 = vpop.permute.xlu0 %221
        %223 = vrot.lane.b32.xlu0 %v154, 116
        %v224 = vpop.permute.xlu0 %223
        %225 = vrot.lane.b32.xlu0 %v155, 116
        %v226 = vpop.permute.xlu0 %225
        %227 = vrot.lane.b32.xlu0 %v156, 116
        %v228 = vpop.permute.xlu0 %227
        %233 = vrot.lane.b32.xlu0 %v153, 114
        %v234 = vpop.permute.xlu0 %233
        %235 = vrot.lane.b32.xlu0 %v154, 114
        %v236 = vpop.permute.xlu0 %235
        %237 = vrot.lane.b32.xlu0 %v155, 114
        %v238 = vpop.permute.xlu0 %237
        %239 = vrot.lane.b32.xlu0 %v156, 114
        %v240 = vpop.permute.xlu0 %239
        %v245 = vcombine.low %v153, %v174
        %v246 = vcombine.high %v153, %v174
        %v248 = vunpack.c.l.s4 1983009808
        %v249 = vunpack.c.0.s8 %v248
        %v250 = vlaneseq
        %v251 = vshrl.u32 %v250, 7
        %v252 = vsub.s32 %v249, %v251
        %v253 = vrot.slane %v245, %v252
        %v255 = vunpack.c.l.s4 1983009808
        %v256 = vunpack.c.0.s8 %v255
        %v257 = vlaneseq
        %v258 = vshrl.u32 %v257, 7
        %v259 = vsub.s32 %v256, %v258
        %v260 = vrot.slane %v246, %v259
        %v261 = vcombine.low %v162, %v186
        %v262 = vcombine.high %v162, %v186
        %v264 = vunpack.c.l.s4 1983009808
        %v265 = vunpack.c.0.s8 %v264
        %v266 = vlaneseq
        %v267 = vshrl.u32 %v266, 7
        %v268 = vsub.s32 %v265, %v267
        %v269 = vrot.slane %v261, %v268
        %v271 = vunpack.c.l.s4 1983009808
        %v272 = vunpack.c.0.s8 %v271
        %v273 = vlaneseq
        %v274 = vshrl.u32 %v273, 7
        %v275 = vsub.s32 %v272, %v274
        %v276 = vrot.slane %v262, %v275
        %v277 = vcombine.low %v198, %v222
        %v278 = vcombine.high %v198, %v222
        %v280 = vunpack.c.l.s4 1983009808
        %v281 = vunpack.c.0.s8 %v280
        %v282 = vlaneseq
        %v283 = vshrl.u32 %v282, 7
        %v284 = vsub.s32 %v281, %v283
        %v285 = vrot.slane %v277, %v284
        %v287 = vunpack.c.l.s4 1983009808
        %v288 = vunpack.c.0.s8 %v287
        %v289 = vlaneseq
        %v290 = vshrl.u32 %v289, 7
        %v291 = vsub.s32 %v288, %v290
        %v292 = vrot.slane %v278, %v291
        %v293 = vcombine.low %v210, %v234
        %v294 = vcombine.high %v210, %v234
        %v296 = vunpack.c.l.s4 1983009808
        %v297 = vunpack.c.0.s8 %v296
        %v298 = vlaneseq
        %v299 = vshrl.u32 %v298, 7
        %v300 = vsub.s32 %v297, %v299
        %v301 = vrot.slane %v293, %v300
        %v303 = vunpack.c.l.s4 1983009808
        %v304 = vunpack.c.0.s8 %v303
        %v305 = vlaneseq
        %v306 = vshrl.u32 %v305, 7
        %v307 = vsub.s32 %v304, %v306
        %v308 = vrot.slane %v294, %v307
        %v309 = vcombine.low %v253, %v269
        %v310 = vcombine.high %v253, %v269
        %v312 = vunpack.c.l.s4 1934713408
        %v313 = vunpack.c.0.s8 %v312
        %v314 = vlaneseq
        %v315 = vshrl.u32 %v314, 7
        %v316 = vsub.s32 %v313, %v315
        %v317 = vrot.slane %v309, %v316
        %v319 = vunpack.c.l.s4 1934713408
        %v320 = vunpack.c.0.s8 %v319
        %v321 = vlaneseq
        %v322 = vshrl.u32 %v321, 7
        %v323 = vsub.s32 %v320, %v322
        %v324 = vrot.slane %v310, %v323
        %v325 = vcombine.low %v260, %v276
        %v326 = vcombine.high %v260, %v276
        %v328 = vunpack.c.l.s4 1934713408
        %v329 = vunpack.c.0.s8 %v328
        %v330 = vlaneseq
        %v331 = vshrl.u32 %v330, 7
        %v332 = vsub.s32 %v329, %v331
        %v333 = vrot.slane %v325, %v332
        %v335 = vunpack.c.l.s4 1934713408
        %v336 = vunpack.c.0.s8 %v335
        %v337 = vlaneseq
        %v338 = vshrl.u32 %v337, 7
        %v339 = vsub.s32 %v336, %v338
        %v340 = vrot.slane %v326, %v339
        %v341 = vcombine.low %v285, %v301
        %v342 = vcombine.high %v285, %v301
        %v344 = vunpack.c.l.s4 1934713408
        %v345 = vunpack.c.0.s8 %v344
        %v346 = vlaneseq
        %v347 = vshrl.u32 %v346, 7
        %v348 = vsub.s32 %v345, %v347
        %v349 = vrot.slane %v341, %v348
        %v351 = vunpack.c.l.s4 1934713408
        %v352 = vunpack.c.0.s8 %v351
        %v353 = vlaneseq
        %v354 = vshrl.u32 %v353, 7
        %v355 = vsub.s32 %v352, %v354
        %v356 = vrot.slane %v342, %v355
        %v357 = vcombine.low %v292, %v308
        %v358 = vcombine.high %v292, %v308
        %v360 = vunpack.c.l.s4 1934713408
        %v361 = vunpack.c.0.s8 %v360
        %v362 = vlaneseq
        %v363 = vshrl.u32 %v362, 7
        %v364 = vsub.s32 %v361, %v363
        %v365 = vrot.slane %v357, %v364
        %v367 = vunpack.c.l.s4 1934713408
        %v368 = vunpack.c.0.s8 %v367
        %v369 = vlaneseq
        %v370 = vshrl.u32 %v369, 7
        %v371 = vsub.s32 %v368, %v370
        %v372 = vrot.slane %v358, %v371
        %v373 = vcombine.low %v317, %v349
        %v374 = vcombine.high %v317, %v349
        %v375 = vcombine.low %v324, %v356
        %v376 = vcombine.high %v324, %v356
        %v377 = vcombine.low %v333, %v365
        %v378 = vcombine.high %v333, %v365
        %v379 = vcombine.low %v340, %v372
        %v380 = vcombine.high %v340, %v372
        %v381 = vcombine.low %v154, %v176
        %v382 = vcombine.high %v154, %v176
        %v384 = vunpack.c.l.s4 1983009808
        %v385 = vunpack.c.0.s8 %v384
        %v386 = vlaneseq
        %v387 = vshrl.u32 %v386, 7
        %v388 = vsub.s32 %v385, %v387
        %v389 = vrot.slane %v381, %v388
        %v391 = vunpack.c.l.s4 1983009808
        %v392 = vunpack.c.0.s8 %v391
        %v393 = vlaneseq
        %v394 = vshrl.u32 %v393, 7
        %v395 = vsub.s32 %v392, %v394
        %v396 = vrot.slane %v382, %v395
        %v397 = vcombine.low %v164, %v188
        %v398 = vcombine.high %v164, %v188
        %v400 = vunpack.c.l.s4 1983009808
        %v401 = vunpack.c.0.s8 %v400
        %v402 = vlaneseq
        %v403 = vshrl.u32 %v402, 7
        %v404 = vsub.s32 %v401, %v403
        %v405 = vrot.slane %v397, %v404
        %v407 = vunpack.c.l.s4 1983009808
        %v408 = vunpack.c.0.s8 %v407
        %v409 = vlaneseq
        %v410 = vshrl.u32 %v409, 7
        %v411 = vsub.s32 %v408, %v410
        %v412 = vrot.slane %v398, %v411
        %v413 = vcombine.low %v200, %v224
        %v414 = vcombine.high %v200, %v224
        %v416 = vunpack.c.l.s4 1983009808
        %v417 = vunpack.c.0.s8 %v416
        %v418 = vlaneseq
        %v419 = vshrl.u32 %v418, 7
        %v420 = vsub.s32 %v417, %v419
        %v421 = vrot.slane %v413, %v420
        %v423 = vunpack.c.l.s4 1983009808
        %v424 = vunpack.c.0.s8 %v423
        %v425 = vlaneseq
        %v426 = vshrl.u32 %v425, 7
        %v427 = vsub.s32 %v424, %v426
        %v428 = vrot.slane %v414, %v427
        %v429 = vcombine.low %v212, %v236
        %v430 = vcombine.high %v212, %v236
        %v432 = vunpack.c.l.s4 1983009808
        %v433 = vunpack.c.0.s8 %v432
        %v434 = vlaneseq
        %v435 = vshrl.u32 %v434, 7
        %v436 = vsub.s32 %v433, %v435
        %v437 = vrot.slane %v429, %v436
        %v439 = vunpack.c.l.s4 1983009808
        %v440 = vunpack.c.0.s8 %v439
        %v441 = vlaneseq
        %v442 = vshrl.u32 %v441, 7
        %v443 = vsub.s32 %v440, %v442
        %v444 = vrot.slane %v430, %v443
        %v445 = vcombine.low %v389, %v405
        %v446 = vcombine.high %v389, %v405
        %v448 = vunpack.c.l.s4 1934713408
        %v449 = vunpack.c.0.s8 %v448
        %v450 = vlaneseq
        %v451 = vshrl.u32 %v450, 7
        %v452 = vsub.s32 %v449, %v451
        %v453 = vrot.slane %v445, %v452
        %v455 = vunpack.c.l.s4 1934713408
        %v456 = vunpack.c.0.s8 %v455
        %v457 = vlaneseq
        %v458 = vshrl.u32 %v457, 7
        %v459 = vsub.s32 %v456, %v458
        %v460 = vrot.slane %v446, %v459
        %v461 = vcombine.low %v396, %v412
        %v462 = vcombine.high %v396, %v412
        %v464 = vunpack.c.l.s4 1934713408
        %v465 = vunpack.c.0.s8 %v464
        %v466 = vlaneseq
        %v467 = vshrl.u32 %v466, 7
        %v468 = vsub.s32 %v465, %v467
        %v469 = vrot.slane %v461, %v468
        %v471 = vunpack.c.l.s4 1934713408
        %v472 = vunpack.c.0.s8 %v471
        %v473 = vlaneseq
        %v474 = vshrl.u32 %v473, 7
        %v475 = vsub.s32 %v472, %v474
        %v476 = vrot.slane %v462, %v475
        %v477 = vcombine.low %v421, %v437
        %v478 = vcombine.high %v421, %v437
        %v480 = vunpack.c.l.s4 1934713408
        %v481 = vunpack.c.0.s8 %v480
        %v482 = vlaneseq
        %v483 = vshrl.u32 %v482, 7
        %v484 = vsub.s32 %v481, %v483
        %v485 = vrot.slane %v477, %v484
        %v487 = vunpack.c.l.s4 1934713408
        %v488 = vunpack.c.0.s8 %v487
        %v489 = vlaneseq
        %v490 = vshrl.u32 %v489, 7
        %v491 = vsub.s32 %v488, %v490
        %v492 = vrot.slane %v478, %v491
        %v493 = vcombine.low %v428, %v444
        %v494 = vcombine.high %v428, %v444
        %v496 = vunpack.c.l.s4 1934713408
        %v497 = vunpack.c.0.s8 %v496
        %v498 = vlaneseq
        %v499 = vshrl.u32 %v498, 7
        %v500 = vsub.s32 %v497, %v499
        %v501 = vrot.slane %v493, %v500
        %v503 = vunpack.c.l.s4 1934713408
        %v504 = vunpack.c.0.s8 %v503
        %v505 = vlaneseq
        %v506 = vshrl.u32 %v505, 7
        %v507 = vsub.s32 %v504, %v506
        %v508 = vrot.slane %v494, %v507
        %v509 = vcombine.low %v453, %v485
        %v510 = vcombine.high %v453, %v485
        %v511 = vcombine.low %v460, %v492
        %v512 = vcombine.high %v460, %v492
        %v513 = vcombine.low %v469, %v501
        %v514 = vcombine.high %v469, %v501
        %v515 = vcombine.low %v476, %v508
        %v516 = vcombine.high %v476, %v508
        %v517 = vcombine.low %v155, %v178
        %v518 = vcombine.high %v155, %v178
        %v520 = vunpack.c.l.s4 1983009808
        %v521 = vunpack.c.0.s8 %v520
        %v522 = vlaneseq
        %v523 = vshrl.u32 %v522, 7
        %v524 = vsub.s32 %v521, %v523
        %v525 = vrot.slane %v517, %v524
        %v527 = vunpack.c.l.s4 1983009808
        %v528 = vunpack.c.0.s8 %v527
        %v529 = vlaneseq
        %v530 = vshrl.u32 %v529, 7
        %v531 = vsub.s32 %v528, %v530
        %v532 = vrot.slane %v518, %v531
        %v533 = vcombine.low %v166, %v190
        %v534 = vcombine.high %v166, %v190
        %v536 = vunpack.c.l.s4 1983009808
        %v537 = vunpack.c.0.s8 %v536
        %v538 = vlaneseq
        %v539 = vshrl.u32 %v538, 7
        %v540 = vsub.s32 %v537, %v539
        %v541 = vrot.slane %v533, %v540
        %v543 = vunpack.c.l.s4 1983009808
        %v544 = vunpack.c.0.s8 %v543
        %v545 = vlaneseq
        %v546 = vshrl.u32 %v545, 7
        %v547 = vsub.s32 %v544, %v546
        %v548 = vrot.slane %v534, %v547
        %v549 = vcombine.low %v202, %v226
        %v550 = vcombine.high %v202, %v226
        %v552 = vunpack.c.l.s4 1983009808
        %v553 = vunpack.c.0.s8 %v552
        %v554 = vlaneseq
        %v555 = vshrl.u32 %v554, 7
        %v556 = vsub.s32 %v553, %v555
        %v557 = vrot.slane %v549, %v556
        %v559 = vunpack.c.l.s4 1983009808
        %v560 = vunpack.c.0.s8 %v559
        %v561 = vlaneseq
        %v562 = vshrl.u32 %v561, 7
        %v563 = vsub.s32 %v560, %v562
        %v564 = vrot.slane %v550, %v563
        %v565 = vcombine.low %v214, %v238
        %v566 = vcombine.high %v214, %v238
        %v568 = vunpack.c.l.s4 1983009808
        %v569 = vunpack.c.0.s8 %v568
        %v570 = vlaneseq
        %v571 = vshrl.u32 %v570, 7
        %v572 = vsub.s32 %v569, %v571
        %v573 = vrot.slane %v565, %v572
        %v575 = vunpack.c.l.s4 1983009808
        %v576 = vunpack.c.0.s8 %v575
        %v577 = vlaneseq
        %v578 = vshrl.u32 %v577, 7
        %v579 = vsub.s32 %v576, %v578
        %v580 = vrot.slane %v566, %v579
        %v581 = vcombine.low %v525, %v541
        %v582 = vcombine.high %v525, %v541
        %v584 = vunpack.c.l.s4 1934713408
        %v585 = vunpack.c.0.s8 %v584
        %v586 = vlaneseq
        %v587 = vshrl.u32 %v586, 7
        %v588 = vsub.s32 %v585, %v587
        %v589 = vrot.slane %v581, %v588
        %v591 = vunpack.c.l.s4 1934713408
        %v592 = vunpack.c.0.s8 %v591
        %v593 = vlaneseq
        %v594 = vshrl.u32 %v593, 7
        %v595 = vsub.s32 %v592, %v594
        %v596 = vrot.slane %v582, %v595
        %v597 = vcombine.low %v532, %v548
        %v598 = vcombine.high %v532, %v548
        %v600 = vunpack.c.l.s4 1934713408
        %v601 = vunpack.c.0.s8 %v600
        %v602 = vlaneseq
        %v603 = vshrl.u32 %v602, 7
        %v604 = vsub.s32 %v601, %v603
        %v605 = vrot.slane %v597, %v604
        %v607 = vunpack.c.l.s4 1934713408
        %v608 = vunpack.c.0.s8 %v607
        %v609 = vlaneseq
        %v610 = vshrl.u32 %v609, 7
        %v611 = vsub.s32 %v608, %v610
        %v612 = vrot.slane %v598, %v611
        %v613 = vcombine.low %v557, %v573
        %v614 = vcombine.high %v557, %v573
        %v616 = vunpack.c.l.s4 1934713408
        %v617 = vunpack.c.0.s8 %v616
        %v618 = vlaneseq
        %v619 = vshrl.u32 %v618, 7
        %v620 = vsub.s32 %v617, %v619
        %v621 = vrot.slane %v613, %v620
        %v623 = vunpack.c.l.s4 1934713408
        %v624 = vunpack.c.0.s8 %v623
        %v625 = vlaneseq
        %v626 = vshrl.u32 %v625, 7
        %v627 = vsub.s32 %v624, %v626
        %v628 = vrot.slane %v614, %v627
        %v629 = vcombine.low %v564, %v580
        %v630 = vcombine.high %v564, %v580
        %v632 = vunpack.c.l.s4 1934713408
        %v633 = vunpack.c.0.s8 %v632
        %v634 = vlaneseq
        %v635 = vshrl.u32 %v634, 7
        %v636 = vsub.s32 %v633, %v635
        %v637 = vrot.slane %v629, %v636
        %v639 = vunpack.c.l.s4 1934713408
        %v640 = vunpack.c.0.s8 %v639
        %v641 = vlaneseq
        %v642 = vshrl.u32 %v641, 7
        %v643 = vsub.s32 %v640, %v642
        %v644 = vrot.slane %v630, %v643
        %v645 = vcombine.low %v589, %v621
        %v646 = vcombine.high %v589, %v621
        %v647 = vcombine.low %v596, %v628
        %v648 = vcombine.high %v596, %v628
        %v649 = vcombine.low %v605, %v637
        %v650 = vcombine.high %v605, %v637
        %v651 = vcombine.low %v612, %v644
        %v652 = vcombine.high %v612, %v644
        %v653 = vcombine.low %v156, %v180
        %v654 = vcombine.high %v156, %v180
        %v656 = vunpack.c.l.s4 1983009808
        %v657 = vunpack.c.0.s8 %v656
        %v658 = vlaneseq
        %v659 = vshrl.u32 %v658, 7
        %v660 = vsub.s32 %v657, %v659
        %v661 = vrot.slane %v653, %v660
        %v663 = vunpack.c.l.s4 1983009808
        %v664 = vunpack.c.0.s8 %v663
        %v665 = vlaneseq
        %v666 = vshrl.u32 %v665, 7
        %v667 = vsub.s32 %v664, %v666
        %v668 = vrot.slane %v654, %v667
        %v669 = vcombine.low %v168, %v192
        %v670 = vcombine.high %v168, %v192
        %v672 = vunpack.c.l.s4 1983009808
        %v673 = vunpack.c.0.s8 %v672
        %v674 = vlaneseq
        %v675 = vshrl.u32 %v674, 7
        %v676 = vsub.s32 %v673, %v675
        %v677 = vrot.slane %v669, %v676
        %v679 = vunpack.c.l.s4 1983009808
        %v680 = vunpack.c.0.s8 %v679
        %v681 = vlaneseq
        %v682 = vshrl.u32 %v681, 7
        %v683 = vsub.s32 %v680, %v682
        %v684 = vrot.slane %v670, %v683
        %v685 = vcombine.low %v204, %v228
        %v686 = vcombine.high %v204, %v228
        %v688 = vunpack.c.l.s4 1983009808
        %v689 = vunpack.c.0.s8 %v688
        %v690 = vlaneseq
        %v691 = vshrl.u32 %v690, 7
        %v692 = vsub.s32 %v689, %v691
        %v693 = vrot.slane %v685, %v692
        %v695 = vunpack.c.l.s4 1983009808
        %v696 = vunpack.c.0.s8 %v695
        %v697 = vlaneseq
        %v698 = vshrl.u32 %v697, 7
        %v699 = vsub.s32 %v696, %v698
        %v700 = vrot.slane %v686, %v699
        %v701 = vcombine.low %v216, %v240
        %v702 = vcombine.high %v216, %v240
        %v704 = vunpack.c.l.s4 1983009808
        %v705 = vunpack.c.0.s8 %v704
        %v706 = vlaneseq
        %v707 = vshrl.u32 %v706, 7
        %v708 = vsub.s32 %v705, %v707
        %v709 = vrot.slane %v701, %v708
        %v711 = vunpack.c.l.s4 1983009808
        %v712 = vunpack.c.0.s8 %v711
        %v713 = vlaneseq
        %v714 = vshrl.u32 %v713, 7
        %v715 = vsub.s32 %v712, %v714
        %v716 = vrot.slane %v702, %v715
        %v717 = vcombine.low %v661, %v677
        %v718 = vcombine.high %v661, %v677
        %v720 = vunpack.c.l.s4 1934713408
        %v721 = vunpack.c.0.s8 %v720
        %v722 = vlaneseq
        %v723 = vshrl.u32 %v722, 7
        %v724 = vsub.s32 %v721, %v723
        %v725 = vrot.slane %v717, %v724
        %v727 = vunpack.c.l.s4 1934713408
        %v728 = vunpack.c.0.s8 %v727
        %v729 = vlaneseq
        %v730 = vshrl.u32 %v729, 7
        %v731 = vsub.s32 %v728, %v730
        %v732 = vrot.slane %v718, %v731
        %v733 = vcombine.low %v668, %v684
        %v734 = vcombine.high %v668, %v684
        %v736 = vunpack.c.l.s4 1934713408
        %v737 = vunpack.c.0.s8 %v736
        %v738 = vlaneseq
        %v739 = vshrl.u32 %v738, 7
        %v740 = vsub.s32 %v737, %v739
        %v741 = vrot.slane %v733, %v740
        %v743 = vunpack.c.l.s4 1934713408
        %v744 = vunpack.c.0.s8 %v743
        %v745 = vlaneseq
        %v746 = vshrl.u32 %v745, 7
        %v747 = vsub.s32 %v744, %v746
        %v748 = vrot.slane %v734, %v747
        %v749 = vcombine.low %v693, %v709
        %v750 = vcombine.high %v693, %v709
        %v752 = vunpack.c.l.s4 1934713408
        %v753 = vunpack.c.0.s8 %v752
        %v754 = vlaneseq
        %v755 = vshrl.u32 %v754, 7
        %v756 = vsub.s32 %v753, %v755
        %v757 = vrot.slane %v749, %v756
        %v759 = vunpack.c.l.s4 1934713408
        %v760 = vunpack.c.0.s8 %v759
        %v761 = vlaneseq
        %v762 = vshrl.u32 %v761, 7
        %v763 = vsub.s32 %v760, %v762
        %v764 = vrot.slane %v750, %v763
        %v765 = vcombine.low %v700, %v716
        %v766 = vcombine.high %v700, %v716
        %v768 = vunpack.c.l.s4 1934713408
        %v769 = vunpack.c.0.s8 %v768
        %v770 = vlaneseq
        %v771 = vshrl.u32 %v770, 7
        %v772 = vsub.s32 %v769, %v771
        %v773 = vrot.slane %v765, %v772
        %v775 = vunpack.c.l.s4 1934713408
        %v776 = vunpack.c.0.s8 %v775
        %v777 = vlaneseq
        %v778 = vshrl.u32 %v777, 7
        %v779 = vsub.s32 %v776, %v778
        %v780 = vrot.slane %v766, %v779
        %v781 = vcombine.low %v725, %v757
        %v782 = vcombine.high %v725, %v757
        %v783 = vcombine.low %v732, %v764
        %v784 = vcombine.high %v732, %v764
        %v785 = vcombine.low %v741, %v773
        %v786 = vcombine.high %v741, %v773
        %v787 = vcombine.low %v748, %v780
        %v788 = vcombine.high %v748, %v780
        %vm789 = vcmask 15360
        %v790 = vsel %vm789, %v373, -inf
        %791 = vmax.xlane.f32.xlu0 %v790
        %v792 = vpop.xlane.xlu0 %791
        %v793 = vsel %vm789, %v374, -inf
        %794 = vmax.xlane.f32.xlu0 %v793
        %v795 = vpop.xlane.xlu0 %794
        %v796 = vsel %vm789, %v375, -inf
        %797 = vmax.xlane.f32.xlu0 %v796
        %v798 = vpop.xlane.xlu0 %797
        %v799 = vsel %vm789, %v376, -inf
        %800 = vmax.xlane.f32.xlu0 %v799
        %v801 = vpop.xlane.xlu0 %800
        %v802 = vsel %vm789, %v377, -inf
        %803 = vmax.xlane.f32.xlu0 %v802
        %v804 = vpop.xlane.xlu0 %803
        %v805 = vsel %vm789, %v378, -inf
        %806 = vmax.xlane.f32.xlu0 %v805
        %v807 = vpop.xlane.xlu0 %806
        %v808 = vsel %vm789, %v379, -inf
        %809 = vmax.xlane.f32.xlu0 %v808
        %v810 = vpop.xlane.xlu0 %809
        %v811 = vsel %vm789, %v380, -inf
        %812 = vmax.xlane.f32.xlu0 %v811
        %v813 = vpop.xlane.xlu0 %812
        %v814 = vsel %vm789, %v509, -inf
        %815 = vmax.xlane.f32.xlu0 %v814
        %v816 = vpop.xlane.xlu0 %815
        %v817 = vsel %vm789, %v510, -inf
        %818 = vmax.xlane.f32.xlu0 %v817
        %v819 = vpop.xlane.xlu0 %818
        %v820 = vsel %vm789, %v511, -inf
        %821 = vmax.xlane.f32.xlu0 %v820
        %v822 = vpop.xlane.xlu0 %821
        %v823 = vsel %vm789, %v512, -inf
        %824 = vmax.xlane.f32.xlu0 %v823
        %v825 = vpop.xlane.xlu0 %824
        %v826 = vsel %vm789, %v513, -inf
        %827 = vmax.xlane.f32.xlu0 %v826
        %v828 = vpop.xlane.xlu0 %827
        %v829 = vsel %vm789, %v514, -inf
        %830 = vmax.xlane.f32.xlu0 %v829
        %v831 = vpop.xlane.xlu0 %830
        %v832 = vsel %vm789, %v515, -inf
        %833 = vmax.xlane.f32.xlu0 %v832
        %v834 = vpop.xlane.xlu0 %833
        %v835 = vsel %vm789, %v516, -inf
        %836 = vmax.xlane.f32.xlu0 %v835
        %v837 = vpop.xlane.xlu0 %836
        %v838 = vsel %vm789, %v645, -inf
        %839 = vmax.xlane.f32.xlu0 %v838
        %v840 = vpop.xlane.xlu0 %839
        %v841 = vsel %vm789, %v646, -inf
        %842 = vmax.xlane.f32.xlu0 %v841
        %v843 = vpop.xlane.xlu0 %842
        %v844 = vsel %vm789, %v647, -inf
        %845 = vmax.xlane.f32.xlu0 %v844
        %v846 = vpop.xlane.xlu0 %845
        %v847 = vsel %vm789, %v648, -inf
        %848 = vmax.xlane.f32.xlu0 %v847
        %v849 = vpop.xlane.xlu0 %848
        %v850 = vsel %vm789, %v649, -inf
        %851 = vmax.xlane.f32.xlu0 %v850
        %v852 = vpop.xlane.xlu0 %851
        %v853 = vsel %vm789, %v650, -inf
        %854 = vmax.xlane.f32.xlu0 %v853
        %v855 = vpop.xlane.xlu0 %854
        %v856 = vsel %vm789, %v651, -inf
        %857 = vmax.xlane.f32.xlu0 %v856
        %v858 = vpop.xlane.xlu0 %857
        %v859 = vsel %vm789, %v652, -inf
        %860 = vmax.xlane.f32.xlu0 %v859
        %v861 = vpop.xlane.xlu0 %860
        %v862 = vsel %vm789, %v781, -inf
        %863 = vmax.xlane.f32.xlu0 %v862
        %v864 = vpop.xlane.xlu0 %863
        %v865 = vsel %vm789, %v782, -inf
        %866 = vmax.xlane.f32.xlu0 %v865
        %v867 = vpop.xlane.xlu0 %866
        %v868 = vsel %vm789, %v783, -inf
        %869 = vmax.xlane.f32.xlu0 %v868
        %v870 = vpop.xlane.xlu0 %869
        %v871 = vsel %vm789, %v784, -inf
        %872 = vmax.xlane.f32.xlu0 %v871
        %v873 = vpop.xlane.xlu0 %872
        %v874 = vsel %vm789, %v785, -inf
        %875 = vmax.xlane.f32.xlu0 %v874
        %v876 = vpop.xlane.xlu0 %875
        %v877 = vsel %vm789, %v786, -inf
        %878 = vmax.xlane.f32.xlu0 %v877
        %v879 = vpop.xlane.xlu0 %878
        %v880 = vsel %vm789, %v787, -inf
        %881 = vmax.xlane.f32.xlu0 %v880
        %v882 = vpop.xlane.xlu0 %881
        %v883 = vsel %vm789, %v788, -inf
        %884 = vmax.xlane.f32.xlu0 %v883
        %v885 = vpop.xlane.xlu0 %884
        %v918 = vlaneseq
        %v919 = vand.u32 %v918, 127
        %v920 = vlaneseq
        %v921 = vshrl.u32 %v920, 7
        %v922 = vsub.s32 %v919, %v921
        %v923 = vrot.slane %v792, %v922
        %v924 = vlaneseq
        %v925 = vshrl.u32 %v924, 7
        %v926 = vsub.s32 %v919, %v925
        %v927 = vrot.slane %v795, %v926
        %v928 = vlaneseq
        %v929 = vshrl.u32 %v928, 7
        %v930 = vsub.s32 %v919, %v929
        %v931 = vrot.slane %v798, %v930
        %v932 = vlaneseq
        %v933 = vshrl.u32 %v932, 7
        %v934 = vsub.s32 %v919, %v933
        %v935 = vrot.slane %v801, %v934
        %v936 = vlaneseq
        %v937 = vshrl.u32 %v936, 7
        %v938 = vsub.s32 %v919, %v937
        %v939 = vrot.slane %v804, %v938
        %v940 = vlaneseq
        %v941 = vshrl.u32 %v940, 7
        %v942 = vsub.s32 %v919, %v941
        %v943 = vrot.slane %v807, %v942
        %v944 = vlaneseq
        %v945 = vshrl.u32 %v944, 7
        %v946 = vsub.s32 %v919, %v945
        %v947 = vrot.slane %v810, %v946
        %v948 = vlaneseq
        %v949 = vshrl.u32 %v948, 7
        %v950 = vsub.s32 %v919, %v949
        %v951 = vrot.slane %v813, %v950
        %v952 = vlaneseq
        %v953 = vshrl.u32 %v952, 7
        %v954 = vsub.s32 %v919, %v953
        %v955 = vrot.slane %v816, %v954
        %v956 = vlaneseq
        %v957 = vshrl.u32 %v956, 7
        %v958 = vsub.s32 %v919, %v957
        %v959 = vrot.slane %v819, %v958
        %v960 = vlaneseq
        %v961 = vshrl.u32 %v960, 7
        %v962 = vsub.s32 %v919, %v961
        %v963 = vrot.slane %v822, %v962
        %v964 = vlaneseq
        %v965 = vshrl.u32 %v964, 7
        %v966 = vsub.s32 %v919, %v965
        %v967 = vrot.slane %v825, %v966
        %v968 = vlaneseq
        %v969 = vshrl.u32 %v968, 7
        %v970 = vsub.s32 %v919, %v969
        %v971 = vrot.slane %v828, %v970
        %v972 = vlaneseq
        %v973 = vshrl.u32 %v972, 7
        %v974 = vsub.s32 %v919, %v973
        %v975 = vrot.slane %v831, %v974
        %v976 = vlaneseq
        %v977 = vshrl.u32 %v976, 7
        %v978 = vsub.s32 %v919, %v977
        %v979 = vrot.slane %v834, %v978
        %v980 = vlaneseq
        %v981 = vshrl.u32 %v980, 7
        %v982 = vsub.s32 %v919, %v981
        %v983 = vrot.slane %v837, %v982
        %v984 = vlaneseq
        %v985 = vshrl.u32 %v984, 7
        %v986 = vsub.s32 %v919, %v985
        %v987 = vrot.slane %v840, %v986
        %v988 = vlaneseq
        %v989 = vshrl.u32 %v988, 7
        %v990 = vsub.s32 %v919, %v989
        %v991 = vrot.slane %v843, %v990
        %v992 = vlaneseq
        %v993 = vshrl.u32 %v992, 7
        %v994 = vsub.s32 %v919, %v993
        %v995 = vrot.slane %v846, %v994
        %v996 = vlaneseq
        %v997 = vshrl.u32 %v996, 7
        %v998 = vsub.s32 %v919, %v997
        %v999 = vrot.slane %v849, %v998
        %v1000 = vlaneseq
        %v1001 = vshrl.u32 %v1000, 7
        %v1002 = vsub.s32 %v919, %v1001
        %v1003 = vrot.slane %v852, %v1002
        %v1004 = vlaneseq
        %v1005 = vshrl.u32 %v1004, 7
        %v1006 = vsub.s32 %v919, %v1005
        %v1007 = vrot.slane %v855, %v1006
        %v1008 = vlaneseq
        %v1009 = vshrl.u32 %v1008, 7
        %v1010 = vsub.s32 %v919, %v1009
        %v1011 = vrot.slane %v858, %v1010
        %v1012 = vlaneseq
        %v1013 = vshrl.u32 %v1012, 7
        %v1014 = vsub.s32 %v919, %v1013
        %v1015 = vrot.slane %v861, %v1014
        %v1016 = vlaneseq
        %v1017 = vshrl.u32 %v1016, 7
        %v1018 = vsub.s32 %v919, %v1017
        %v1019 = vrot.slane %v864, %v1018
        %v1020 = vlaneseq
        %v1021 = vshrl.u32 %v1020, 7
        %v1022 = vsub.s32 %v919, %v1021
        %v1023 = vrot.slane %v867, %v1022
        %v1024 = vlaneseq
        %v1025 = vshrl.u32 %v1024, 7
        %v1026 = vsub.s32 %v919, %v1025
        %v1027 = vrot.slane %v870, %v1026
        %v1028 = vlaneseq
        %v1029 = vshrl.u32 %v1028, 7
        %v1030 = vsub.s32 %v919, %v1029
        %v1031 = vrot.slane %v873, %v1030
        %v1032 = vlaneseq
        %v1033 = vshrl.u32 %v1032, 7
        %v1034 = vsub.s32 %v919, %v1033
        %v1035 = vrot.slane %v876, %v1034
        %v1036 = vlaneseq
        %v1037 = vshrl.u32 %v1036, 7
        %v1038 = vsub.s32 %v919, %v1037
        %v1039 = vrot.slane %v879, %v1038
        %v1040 = vlaneseq
        %v1041 = vshrl.u32 %v1040, 7
        %v1042 = vsub.s32 %v919, %v1041
        %v1043 = vrot.slane %v882, %v1042
        %v1044 = vlaneseq
        %v1045 = vshrl.u32 %v1044, 7
        %v1046 = vsub.s32 %v919, %v1045
        %v1047 = vrot.slane %v885, %v1046
        %vm1048 = vcmask 1041409
        %v1049 = vsel %vm1048, %v927, %v923
        %vm1050 = vcmask 1042434
        %v1051 = vsel %vm1050, %v931, %v1049
        %vm1052 = vcmask 1043459
        %v1053 = vsel %vm1052, %v935, %v1051
        %vm1054 = vcmask 1044484
        %v1055 = vsel %vm1054, %v939, %v1053
        %vm1056 = vcmask 1045509
        %v1057 = vsel %vm1056, %v943, %v1055
        %vm1058 = vcmask 1046534
        %v1059 = vsel %vm1058, %v947, %v1057
        %vm1060 = vcmask 1047559
        %v1061 = vsel %vm1060, %v951, %v1059
        %v1062 = vsel %vm1048, %v959, %v955
        %v1063 = vsel %vm1050, %v963, %v1062
        %v1064 = vsel %vm1052, %v967, %v1063
        %v1065 = vsel %vm1054, %v971, %v1064
        %v1066 = vsel %vm1056, %v975, %v1065
        %v1067 = vsel %vm1058, %v979, %v1066
        %v1068 = vsel %vm1060, %v983, %v1067
        %v1069 = vsel %vm1048, %v991, %v987
        %v1070 = vsel %vm1050, %v995, %v1069
        %v1071 = vsel %vm1052, %v999, %v1070
        %v1072 = vsel %vm1054, %v1003, %v1071
        %v1073 = vsel %vm1056, %v1007, %v1072
        %v1074 = vsel %vm1058, %v1011, %v1073
        %v1075 = vsel %vm1060, %v1015, %v1074
        %v1076 = vsel %vm1048, %v1023, %v1019
        %v1077 = vsel %vm1050, %v1027, %v1076
        %v1078 = vsel %vm1052, %v1031, %v1077
        %v1079 = vsel %vm1054, %v1035, %v1078
        %v1080 = vsel %vm1056, %v1039, %v1079
        %v1081 = vsel %vm1058, %v1043, %v1080
        %v1082 = vsel %vm1060, %v1047, %v1081
        %vm1087 = vcmask 64512
        %1088 = vst.msk [vmem:[%s135] sm:$0xff] %vm1087, %v1061
        %1089 = vst.msk [vmem:[%s135 + $0x8] sm:$0xff] %vm1087, %v1068
        %1090 = vst.msk [vmem:[%s135 + $0x10] sm:$0xff] %vm1087, %v1075
        %1091 = vst.msk [vmem:[%s135 + $0x18] sm:$0xff] %vm1087, %v1082
        %s1092 = sand.u32 %s52, 1
        %s1093 = scalar_lea.sflag [#allocation4], %s1092
        %s1094 = sand.u32 %s52, 1
        %s1095 = smul.addr %s1094, 32
        %s1096 = scalar_lea.vmem [#allocation5], %s1095
        // Predicated region
        $region29: #{tpu_custom_call.1} parent=23 // pred_check
          %p1097 = pneg %p62
        $region30: #{tpu_custom_call.1} parent=23 // pred_check_branch
          %1099 = sbr.rel (%p1097) target = $region32
        $region31: #{tpu_custom_call.1} parent=23 // pred_region
          %s1100 = smul.u32 4, %s18
          %s1102 = ssub.s32 512, 512
          %1103 = vsyncadd %s1093, %s1102
          %s1104 = smul.addr %s1100, 128
          %s1105 = scalar_lea.hbm %s1, %s1104
          %s1106 = sshll.u32 %s1096, 4
          %s1107 = int_to_ptr.vmem [resolvable:$true] %s1106
          %1112 = dma.vmem_to_hbm [thread:$0]  %s1107, 512, %s1105, %s1093, 128, 128, 8
        $region32: #{tpu_custom_call.1} parent=23 // pred_fallthru
          _
      $region24: #{tpu_custom_call.1} parent=5 // pred_fallthru
        _
      %p1113 = scmp.le.s32.totalorder 2, %s13
      // Predicated region
      $region33: #{tpu_custom_call.1} parent=5 // pred_check
        %p1114 = pneg %p1113
      $region34: #{tpu_custom_call.1} parent=5 // pred_check_branch
        %1116 = sbr.rel (%p1114) target = $region36
      $region35: #{tpu_custom_call.1} parent=5 // pred_region
        %s1117 = ssub.s32 %s13, 2
        // Predicated region
        $region37: #{tpu_custom_call.1} parent=35 // pred_check
          %p1118 = pneg %p68
        $region38: #{tpu_custom_call.1} parent=35 // pred_check_branch
          %1120 = sbr.rel (%p1118) target = $region40
        $region39: #{tpu_custom_call.1} parent=35 // pred_region
          %s1121 = sand.u32 %s53, 1
          %s1122 = scalar_lea.sflag [#allocation4], %s1121
          %s1123 = sand.u32 %s53, 1
          %s1124 = smul.addr %s1123, 32
          %s1125 = scalar_lea.vmem [#allocation5], %s1124
          %1126 = dma.done %s1122, 512
        $region40: #{tpu_custom_call.1} parent=35 // pred_fallthru
          _
      $region36: #{tpu_custom_call.1} parent=5 // pred_fallthru
        _
    $region6: #{tpu_custom_call.1} parent=1 // loop_footer
      %s17 = sadd.s32 1, %s13
    $region7: #{tpu_custom_call.1} parent=1 // loop_footer_branch
      %12 = sbr.rel target = $region3
    $region8: #{tpu_custom_call.1} parent=1 // loop_exit
      _
    %1127 = vsyncpa [#allocation3], 1
    %s1128 = scalar_lea.sflag [#allocation3], 1
    %1129 = vsyncpa %s1128, 1
    %1130 = vsyncpa [#allocation4], 1
    %s1131 = scalar_lea.sflag [#allocation4], 1
    %1132 = vsyncpa %s1131, 1

</llo_original>
